<compile_context>
chip_gen: v5e
topology: v5e:2x2
jax: 0.10.0
libtpu: 0.0.40
codegen_flags: <defaults>
</compile_context>

<pallas_src>
import math
from functools import partial

import jax
import jax.numpy as jnp
from jax import lax
from jax.experimental import pallas as pl
from jax.experimental.pallas import tpu as pltpu


def _attention_kernel(q_ref, k_ref, v_ref, o_ref, w_ref, *, exp_in_bf16):
    # Kernel refs (B, H squeezed): q (TQ, dk), k (Sk, dk), v (Sk, dv),
    #                              o (TQ, dv), w (TQ, Sk).
    dk = q_ref.shape[-1]
    scale = 1.0 / math.sqrt(float(dk))

    q = q_ref[...]
    k = k_ref[...]
    v = v_ref[...]

    if q.dtype == jnp.float32:
        # Cheap fold into Q (TQ*dk mults) keeps f32 precision before the MXU.
        q = q * jnp.float32(scale)
        sim = lax.dot_general(
            q, k,
            dimension_numbers=(((1,), (1,)), ((), ())),
            preferred_element_type=jnp.float32,
        )
    else:
        # bf16 inputs: don't round Q with a bf16 multiply; scale sim in f32.
        sim = lax.dot_general(
            q, k,
            dimension_numbers=(((1,), (1,)), ((), ())),
            preferred_element_type=jnp.float32,
        )
        sim = sim * jnp.float32(scale)

    # TODO(synk): ApplyAttentionMask is not defined in the reference source;
    # a mask would be applied to `sim` here, before max/exp (f32 path).

    # Numerically-stable softmax over keys.
    m = jnp.max(sim, axis=-1, keepdims=True)
    if exp_in_bf16:
        # EUP bf16 exp (~2x rate on v6e/v7x); denominator accumulated in f32.
        e = jnp.exp((sim - m).astype(jnp.bfloat16)).astype(jnp.float32)
    else:
        e = jnp.exp(sim - m)
    denom = jnp.sum(e, axis=-1, keepdims=True)
    w_f32 = e * pl.reciprocal(denom, approx=True)   # EUP vrcp, keeps VALU free

    # Single cast: same array is stored and fed to the second matmul.
    w = w_f32.astype(v.dtype)
    if w_ref.dtype == v.dtype:
        w_ref[...] = w
    else:
        w_ref[...] = w_f32.astype(w_ref.dtype)

    out = lax.dot_general(
        w, v,
        dimension_numbers=(((1,), (0,)), ((), ())),
        preferred_element_type=jnp.float32,
    )
    o_ref[...] = out.astype(o_ref.dtype)


def _vmem_bytes_estimate(tq, sk, dk, dv, in_itemsize, w_itemsize):
    # Double-buffered I/O blocks + rough f32 softmax intermediates.
    blocks = (tq * dk + sk * dk + sk * dv + tq * dv) * in_itemsize + tq * sk * w_itemsize
    interm = 3 * tq * sk * 4
    return 2 * blocks + interm


def _choose_q_tile(sq, sk, dk, dv, in_itemsize, w_itemsize,
                   target=512, budget=40 * 1024 * 1024):
    """Largest divisor of Sq <= target whose VMEM estimate fits the budget."""
    best = 1
    for d in range(1, sq + 1):
        if sq % d != 0 or d > target:
            continue
        if _vmem_bytes_estimate(d, sk, dk, dv, in_itemsize, w_itemsize) <= budget:
            best = max(best, d)
    return best


def _attention_pallas(q, k, v, weights_dtype=None, exp_in_bf16=None):
    """q [B, H, Sq, dk], k [B, H, Sk, dk], v [B, H, Sk, dv]
    -> (output [B, H, Sq, dv], weights [B, H, Sq, Sk])."""
    B, H, Sq, dk = q.shape
    Sk, dv = v.shape[-2], v.shape[-1]

    w_dtype = jnp.dtype(weights_dtype) if weights_dtype is not None else jnp.dtype(q.dtype)
    if exp_in_bf16 is None:
        exp_in_bf16 = jnp.dtype(q.dtype) == jnp.bfloat16  # NOTE: pass False on v5e.

    in_itemsize = jnp.dtype(q.dtype).itemsize
    w_itemsize = w_dtype.itemsize
    TQ = _choose_q_tile(Sq, Sk, dk, dv, in_itemsize, w_itemsize)

    vmem_limit = int(
        min(48 * 1024 * 1024,
            max(32 * 1024 * 1024,
                2 * _vmem_bytes_estimate(TQ, Sk, dk, dv, in_itemsize, w_itemsize)))
    )

    sq_ = pl.Squeezed()
    grid = (B, H, Sq // TQ)

    out_shape = (
        jax.ShapeDtypeStruct((B, H, Sq, dv), q.dtype),
        jax.ShapeDtypeStruct((B, H, Sq, Sk), w_dtype),
    )

    # NOTE: for real model sizes Sk / dv should be multiples of 128 so the
    # output stores are lane-dense (unmasked vst); full-extent blocks are used
    # here so odd demo sizes still compile.
    return pl.pallas_call(
        partial(_attention_kernel, exp_in_bf16=exp_in_bf16),
        out_shape=out_shape,
        grid_spec=pltpu.PrefetchScalarGridSpec(
            num_scalar_prefetch=0,
            grid=grid,
            in_specs=[
                pl.BlockSpec((sq_, sq_, TQ, dk), lambda b, h, i: (b, h, i, 0)),
                # K/V ignore the q-tile axis -> stay resident across inner steps.
                pl.BlockSpec((sq_, sq_, Sk, dk), lambda b, h, i: (b, h, 0, 0)),
                pl.BlockSpec((sq_, sq_, Sk, dv), lambda b, h, i: (b, h, 0, 0)),
            ],
            out_specs=[
                pl.BlockSpec((sq_, sq_, TQ, dv), lambda b, h, i: (b, h, i, 0)),
                pl.BlockSpec((sq_, sq_, TQ, Sk), lambda b, h, i: (b, h, i, 0)),
            ],
        ),
        compiler_params=pltpu.CompilerParams(
            dimension_semantics=("parallel", "parallel", "parallel"),
            vmem_limit_bytes=vmem_limit,
        ),
    )(q, k, v)


def attention_qkv(queries, keys, values, mask=None, weights_dtype=None, exp_in_bf16=None):
    """Mirrors AttentionQKV.forward(queries, keys, values, mask=None).

    queries: [B, (H,) Sq, dk], keys: [B, (H,) Sk, dk], values: [B, (H,) Sk, dv]
    Returns (output [B, (H,) Sq, dv], weights [B, (H,) Sq, Sk]).
    """
    # TODO(synk): ApplyAttentionMask undefined in source; mask=None path only.
    assert mask is None, "mask path not implemented"
    had_heads = queries.ndim == 4
    if not had_heads:
        queries = queries[:, None]
        keys = keys[:, None]
        values = values[:, None]
    out, w = _attention_pallas(queries, keys, values,
                               weights_dtype=weights_dtype, exp_in_bf16=exp_in_bf16)
    if not had_heads:
        out = out[:, 0]
        w = w[:, 0]
    return out, w


def _reference(queries, keys, values):
    dk = keys.shape[-1]
    sim = jnp.einsum("...qd,...kd->...qk", queries, keys) / jnp.sqrt(jnp.float32(dk))
    w = jax.nn.softmax(sim, axis=-1)
    out = jnp.einsum("...qk,...kd->...qd", w, values)
    return out, w


if __name__ == "__main__":
    # Shapes per the module's forward: [batch, heads, n_queries/n_keyval, depth].
    batch, n_heads, n_queries, n_keyval = 2, 4, 8, 8
    depth_k, depth_v = 32, 32

    key = jax.random.PRNGKey(0)
    kq, kk, kv = jax.random.split(key, 3)
    queries = jax.random.normal(kq, (batch, n_heads, n_queries, depth_k), dtype=jnp.float32)
    keys = jax.random.normal(kk, (batch, n_heads, n_keyval, depth_k), dtype=jnp.float32)
    values = jax.random.normal(kv, (batch, n_heads, n_keyval, depth_v), dtype=jnp.float32)

    out, weights = attention_qkv(queries, keys, values)
    out = jax.block_until_ready(out)
    weights = jax.block_until_ready(weights)

    ref_out, ref_w = _reference(queries, keys, values)
    assert out.shape == (batch, n_heads, n_queries, depth_v)
    assert weights.shape == (batch, n_heads, n_queries, n_keyval)
    # approx reciprocal + MXU accumulation order -> slightly looser tolerance.
    assert jnp.allclose(out, ref_out, atol=2e-3, rtol=2e-3), "output mismatch vs reference"
    assert jnp.allclose(weights, ref_w, atol=2e-3, rtol=2e-3), "weights mismatch vs reference"

    print("KERNEL_OK")
</pallas_src>

<mosaic_0001>
module attributes {stable_mosaic.version = 11 : i64} {
  func.func @_attention_kernel(%arg0: i32, %arg1: i32, %arg2: i32, %arg3: memref<1x1x8x32xf32, #tpu.memory_space<vmem>>, %arg4: memref<1x1x8x32xf32, #tpu.memory_space<vmem>>, %arg5: memref<1x1x8x32xf32, #tpu.memory_space<vmem>>, %arg6: memref<1x1x8x32xf32, #tpu.memory_space<vmem>>, %arg7: memref<1x1x8x8xf32, #tpu.memory_space<vmem>>) attributes {dimension_semantics = [#tpu.dimension_semantics<parallel>, #tpu.dimension_semantics<parallel>, #tpu.dimension_semantics<parallel>], iteration_bounds = array<i64: 2, 4, 1>, scalar_prefetch = 0 : i64, scratch_operands = 0 : i64, tpu.core_type = #tpu.core_type<tc>, window_params = [{transform_indices = @transform_0, window_bounds = array<i64: 1, 1, 8, 32>}, {transform_indices = @transform_1, window_bounds = array<i64: 1, 1, 8, 32>}, {transform_indices = @transform_2, window_bounds = array<i64: 1, 1, 8, 32>}, {transform_indices = @transform_3, window_bounds = array<i64: 1, 1, 8, 32>}, {transform_indices = @transform_4, window_bounds = array<i64: 1, 1, 8, 8>}]} {
    %c0 = arith.constant 0 : index
    %c0_0 = arith.constant 0 : index
    %c0_1 = arith.constant 0 : index
    %c0_2 = arith.constant 0 : index
    %0 = vector.load %arg3[%c0, %c0_0, %c0_1, %c0_2] : memref<1x1x8x32xf32, #tpu.memory_space<vmem>>, vector<1x1x8x32xf32>
    %1 = vector.shape_cast %0 : vector<1x1x8x32xf32> to vector<8x32xf32>
    %c0_3 = arith.constant 0 : index
    %c0_4 = arith.constant 0 : index
    %c0_5 = arith.constant 0 : index
    %c0_6 = arith.constant 0 : index
    %2 = vector.load %arg4[%c0_3, %c0_4, %c0_5, %c0_6] : memref<1x1x8x32xf32, #tpu.memory_space<vmem>>, vector<1x1x8x32xf32>
    %3 = vector.shape_cast %2 : vector<1x1x8x32xf32> to vector<8x32xf32>
    %c0_7 = arith.constant 0 : index
    %c0_8 = arith.constant 0 : index
    %c0_9 = arith.constant 0 : index
    %c0_10 = arith.constant 0 : index
    %4 = vector.load %arg5[%c0_7, %c0_8, %c0_9, %c0_10] : memref<1x1x8x32xf32, #tpu.memory_space<vmem>>, vector<1x1x8x32xf32>
    %5 = vector.shape_cast %4 : vector<1x1x8x32xf32> to vector<8x32xf32>
    %cst = arith.constant 0.176776692 : f32
    %6 = vector.broadcast %cst : f32 to vector<8x32xf32>
    %7 = arith.mulf %1, %6 : vector<8x32xf32>
    %cst_11 = arith.constant dense<0.000000e+00> : vector<8x8xf32>
    %8 = tpu.matmul %7, %3, %cst_11 {dimension_numbers = #tpu.dot_dimension_numbers<[1], [1], [0], [0], [0, 0, 1, 0], [], []>} : vector<8x32xf32>, vector<8x32xf32>, vector<8x8xf32> -> vector<8x8xf32>
    %cst_12 = arith.constant dense<0xFF800000> : vector<8xf32>
    %9 = vector.multi_reduction <maximumf>, %8, %cst_12 [1] : vector<8x8xf32> to vector<8xf32>
    %10 = vector.shape_cast %9 : vector<8xf32> to vector<8x1xf32>
    %11 = vector.broadcast %10 : vector<8x1xf32> to vector<8x8xf32>
    %12 = arith.subf %8, %11 : vector<8x8xf32>
    %13 = math.exp %12 : vector<8x8xf32>
    %cst_13 = arith.constant dense<0.000000e+00> : vector<8xf32>
    %14 = vector.multi_reduction <add>, %13, %cst_13 [1] : vector<8x8xf32> to vector<8xf32>
    %15 = vector.shape_cast %14 : vector<8xf32> to vector<8x1xf32>
    %16 = tpu.reciprocal %15 {approx = true} : vector<8x1xf32> -> vector<8x1xf32>
    %17 = vector.broadcast %16 : vector<8x1xf32> to vector<8x8xf32>
    %18 = arith.mulf %13, %17 : vector<8x8xf32>
    %c0_14 = arith.constant 0 : index
    %c0_15 = arith.constant 0 : index
    %c0_16 = arith.constant 0 : index
    %c0_17 = arith.constant 0 : index
    %19 = vector.load %arg7[%c0_14, %c0_15, %c0_16, %c0_17] : memref<1x1x8x8xf32, #tpu.memory_space<vmem>>, vector<1x1x8x8xf32>
    %20 = vector.shape_cast %19 : vector<1x1x8x8xf32> to vector<8x8xf32>
    %21 = vector.shape_cast %18 : vector<8x8xf32> to vector<1x1x8x8xf32>
    tpu.vector_store %arg7[%c0_14, %c0_15, %c0_16, %c0_17], %21 {strides = array<i32>} : memref<1x1x8x8xf32, #tpu.memory_space<vmem>>, vector<1x1x8x8xf32>,
    %cst_18 = arith.constant dense<0.000000e+00> : vector<8x32xf32>
    %22 = tpu.matmul %18, %5, %cst_18 {dimension_numbers = #tpu.dot_dimension_numbers<[1], [0], [0], [1], [0, 0, 1, 1], [], []>} : vector<8x8xf32>, vector<8x32xf32>, vector<8x32xf32> -> vector<8x32xf32>
    %c0_19 = arith.constant 0 : index
    %c0_20 = arith.constant 0 : index
    %c0_21 = arith.constant 0 : index
    %c0_22 = arith.constant 0 : index
    %23 = vector.load %arg6[%c0_19, %c0_20, %c0_21, %c0_22] : memref<1x1x8x32xf32, #tpu.memory_space<vmem>>, vector<1x1x8x32xf32>
    %24 = vector.shape_cast %23 : vector<1x1x8x32xf32> to vector<8x32xf32>
    %25 = vector.shape_cast %22 : vector<8x32xf32> to vector<1x1x8x32xf32>
    tpu.vector_store %arg6[%c0_19, %c0_20, %c0_21, %c0_22], %25 {strides = array<i32>} : memref<1x1x8x32xf32, #tpu.memory_space<vmem>>, vector<1x1x8x32xf32>,
    return
  }
  func.func @transform_0(%arg0: i32, %arg1: i32, %arg2: i32) -> (i32, i32, i32, i32) {
    %c0_i32 = arith.constant 0 : i32
    %c0_i32_0 = arith.constant 0 : i32
    return %arg0, %arg1, %arg2, %c0_i32 : i32, i32, i32, i32
  }
  func.func @transform_1(%arg0: i32, %arg1: i32, %arg2: i32) -> (i32, i32, i32, i32) {
    %c0_i32 = arith.constant 0 : i32
    %c0_i32_0 = arith.constant 0 : i32
    %c0_i32_1 = arith.constant 0 : i32
    return %arg0, %arg1, %c0_i32, %c0_i32_0 : i32, i32, i32, i32
  }
  func.func @transform_2(%arg0: i32, %arg1: i32, %arg2: i32) -> (i32, i32, i32, i32) {
    %c0_i32 = arith.constant 0 : i32
    %c0_i32_0 = arith.constant 0 : i32
    %c0_i32_1 = arith.constant 0 : i32
    return %arg0, %arg1, %c0_i32, %c0_i32_0 : i32, i32, i32, i32
  }
  func.func @transform_3(%arg0: i32, %arg1: i32, %arg2: i32) -> (i32, i32, i32, i32) {
    %c0_i32 = arith.constant 0 : i32
    %c0_i32_0 = arith.constant 0 : i32
    return %arg0, %arg1, %arg2, %c0_i32 : i32, i32, i32, i32
  }
  func.func @transform_4(%arg0: i32, %arg1: i32, %arg2: i32) -> (i32, i32, i32, i32) {
    %c0_i32 = arith.constant 0 : i32
    %c0_i32_0 = arith.constant 0 : i32
    return %arg0, %arg1, %arg2, %c0_i32 : i32, i32, i32, i32
  }
}

</mosaic_0001>

<llo_original>
// kernel: tpu_custom_call.1
$region0: #{tpu_custom_call.1}
  #allocation0 [shape = 'u32[]', space=smem, size = 0x4, offset = 0x4, fixed_abs, tag = 'smem constant byte address 0x4 - core index']
  #allocation1 [shape = 'u32[72,128]{1,0:T(1,128)}', space=vmem, size = 0x9000, scoped, tag = 'internal scratch']
  %s0 = inlined_call_operand.hbm [shape: f32[2,4,8,32], index: 0, kind: input, shape index: {}]
  %s1 = inlined_call_operand.hbm [shape: f32[2,4,8,32], index: 1, kind: input, shape index: {}]
  %s2 = inlined_call_operand.hbm [shape: f32[2,4,8,32], index: 2, kind: input, shape index: {}]
  %s3 = inlined_call_operand.hbm [shape: f32[2,4,8,32], index: 3, kind: output, shape index: {0}]
  %s4 = inlined_call_operand.hbm [shape: f32[2,4,8,8], index: 4, kind: output, shape index: {1}]
  %5 = xla_tuple %s3, %s4
  %s6 = sld [smem:[#allocation0]]
  $region65: #{tpu_custom_call.1} parent=0
    _
  %s8 = ssub.s32 1, %s6
  %s9 = scalar_select 0, %s8, %s6
  $region1: #{tpu_custom_call.1} parent=0
    #allocation2 [shape = 'u8[8192]{0}', space=vmem, size = 0x2000, scoped, tag = 'input window, operand 0']
    #allocation3 [shape = 's32[2]{0}', space=sflag, size = 0x8, scoped, tag = 'scoped memory for tpu_custom_call.1']
    #allocation4 [shape = 's32[2]{0}', space=sflag, size = 0x8, scoped, tag = 'scoped memory for tpu_custom_call.1']
    #allocation5 [shape = 'u8[8192]{0}', space=vmem, size = 0x2000, scoped, tag = 'input window, operand 1']
    #allocation6 [shape = 's32[2]{0}', space=sflag, size = 0x8, scoped, tag = 'scoped memory for tpu_custom_call.1']
    #allocation7 [shape = 'u8[8192]{0}', space=vmem, size = 0x2000, scoped, tag = 'input window, operand 2']
    #allocation8 [shape = 'u8[8192]{0}', space=vmem, size = 0x2000, scoped, tag = 'output window, operand 0']
    #allocation9 [shape = 'u8[8192]{0}', space=vmem, size = 0x2000, scoped, tag = 'output window, operand 1']
    #allocation10 [shape = 's32[2]{0}', space=sflag, size = 0x8, scoped, tag = 'scoped memory for tpu_custom_call.1']
    %10 = vsyncpa [#allocation3], 0
    %s11 = scalar_lea.sflag [#allocation3], 1
    %12 = vsyncpa %s11, 0
    %13 = vsyncpa [#allocation6], 0
    %s14 = scalar_lea.sflag [#allocation6], 1
    %15 = vsyncpa %s14, 0
    %16 = vsyncpa [#allocation4], 0
    %s17 = scalar_lea.sflag [#allocation4], 1
    %18 = vsyncpa %s17, 0
    %19 = vsyncpa [#allocation10], 0
    %s20 = scalar_lea.sflag [#allocation10], 1
    %21 = vsyncpa %s20, 0
    loop: start=0, step=1, limit=10
    $region2: #{tpu_custom_call.1} parent=1 // loop_pre_header
      _
    $region3: #{tpu_custom_call.1} parent=1 // loop_header
      %s23 = sphi 0, %s27
      %p24 = scmp.ge.s32.totalorder %s23, 10
      %s30 = sphi 0, %s49
      %s31 = sphi 0, %s45
      %s32 = sphi 0, %s41
      %s33 = sphi 0, %s30
      %s34 = sphi 0, %s31
      %s35 = sphi 0, %s32
      %s36 = sphi 0, %s33
      %s37 = sphi 0, %s34
      %s38 = sphi 0, %s35
      %s56 = sphi 0, %s58
      %s59 = sphi 0, %s56
      %s60 = sphi 0, %s59
      %s76 = sphi 0, %s60
      %s84 = sphi 0, %s86
      %s87 = sphi 0, %s84
      %s88 = sphi 0, %s87
      %s104 = sphi 0, %s88
      %s112 = sphi 0, %s114
      %s115 = sphi 0, %s112
      %s116 = sphi 0, %s115
      %s132 = sphi 0, %s116
      %s142 = sphi 0, %s144
      %s145 = sphi 0, %s142
      %s146 = sphi 0, %s145
      %s162 = sphi 0, %s146
      %s172 = sphi 0, %s174
      %s175 = sphi 0, %s172
      %s176 = sphi 0, %s175
      %s192 = sphi 0, %s176
    $region4: #{tpu_custom_call.1} parent=1 // loop_header_branch
      %26 = sbr.rel (%p24) target = $region8
    $region5: #{tpu_custom_call.1} parent=1 // loop_body
      %s28 = ssub.s32 %s23, 1
      %s29 = ssub.s32 %s23, 2
      %s39 = sadd.s32 1, %s32
      %p40 = scmp.ge.s32.totalorder %s39, 1
      %s41 = scalar_select %p40, 0, %s39
      %s42 = sadd.s32 1, %s31
      %s43 = scalar_select %p40, %s42, %s31
      %p44 = scmp.ge.s32.totalorder %s43, 4
      %s45 = scalar_select %p44, 0, %s43
      %s46 = sadd.s32 1, %s30
      %s47 = scalar_select %p44, %s46, %s30
      %p48 = scmp.ge.s32.totalorder %s47, 2
      %s49 = scalar_select %p48, 0, %s47
      %s50 = ssub.s32 %s30, %s49
      %s51 = ssub.s32 %s31, %s45
      %s52 = sor.u32 %s50, %s51
      %s53 = ssub.s32 %s32, %s41
      %s54 = sor.u32 %s52, %s53
      %p55 = scmp.eq.s32.totalorder %s54, 0
      %s57 = sadd.s32 %s56, 1
      %s58 = scalar_select %p55, %s56, %s57
      %p61 = pneg %p55
      %p62 = scmp.eq.s32.totalorder %s23, 7
      %p63 = por %p61, %p62
      %p64 = scmp.ne.s32.totalorder %s56, %s59
      %p65 = scmp.eq.s32.totalorder %s23, 0
      %p66 = por %p64, %p65
      %p67 = scmp.ne.s32.totalorder %s56, %s59
      %p68 = scmp.eq.s32.totalorder %s28, 7
      %p69 = por %p67, %p68
      %p70 = scmp.ne.s32.totalorder %s59, %s60
      %p71 = scmp.eq.s32.totalorder %s28, 0
      %p72 = por %p70, %p71
      %p73 = scmp.ne.s32.totalorder %s59, %s60
      %p74 = scmp.eq.s32.totalorder %s29, 7
      %p75 = por %p73, %p74
      %p77 = scmp.ne.s32.totalorder %s60, %s76
      %p78 = scmp.eq.s32.totalorder %s29, 0
      %p79 = por %p77, %p78
      %s80 = ssub.s32 %s30, %s49
      %s81 = ssub.s32 %s31, %s45
      %s82 = sor.u32 %s80, %s81
      %p83 = scmp.eq.s32.totalorder %s82, 0
      %s85 = sadd.s32 %s84, 1
      %s86 = scalar_select %p83, %s84, %s85
      %p89 = pneg %p83
      %p90 = scmp.eq.s32.totalorder %s23, 7
      %p91 = por %p89, %p90
      %p92 = scmp.ne.s32.totalorder %s84, %s87
      %p93 = scmp.eq.s32.totalorder %s23, 0
      %p94 = por %p92, %p93
      %p95 = scmp.ne.s32.totalorder %s84, %s87
      %p96 = scmp.eq.s32.totalorder %s28, 7
      %p97 = por %p95, %p96
      %p98 = scmp.ne.s32.totalorder %s87, %s88
      %p99 = scmp.eq.s32.totalorder %s28, 0
      %p100 = por %p98, %p99
      %p101 = scmp.ne.s32.totalorder %s87, %s88
      %p102 = scmp.eq.s32.totalorder %s29, 7
      %p103 = por %p101, %p102
      %p105 = scmp.ne.s32.totalorder %s88, %s104
      %p106 = scmp.eq.s32.totalorder %s29, 0
      %p107 = por %p105, %p106
      %s108 = ssub.s32 %s30, %s49
      %s109 = ssub.s32 %s31, %s45
      %s110 = sor.u32 %s108, %s109
      %p111 = scmp.eq.s32.totalorder %s110, 0
      %s113 = sadd.s32 %s112, 1
      %s114 = scalar_select %p111, %s112, %s113
      %p117 = pneg %p111
      %p118 = scmp.eq.s32.totalorder %s23, 7
      %p119 = por %p117, %p118
      %p120 = scmp.ne.s32.totalorder %s112, %s115
      %p121 = scmp.eq.s32.totalorder %s23, 0
      %p122 = por %p120, %p121
      %p123 = scmp.ne.s32.totalorder %s112, %s115
      %p124 = scmp.eq.s32.totalorder %s28, 7
      %p125 = por %p123, %p124
      %p126 = scmp.ne.s32.totalorder %s115, %s116
      %p127 = scmp.eq.s32.totalorder %s28, 0
      %p128 = por %p126, %p127
      %p129 = scmp.ne.s32.totalorder %s115, %s116
      %p130 = scmp.eq.s32.totalorder %s29, 7
      %p131 = por %p129, %p130
      %p133 = scmp.ne.s32.totalorder %s116, %s132
      %p134 = scmp.eq.s32.totalorder %s29, 0
      %p135 = por %p133, %p134
      %s136 = ssub.s32 %s30, %s49
      %s137 = ssub.s32 %s31, %s45
      %s138 = sor.u32 %s136, %s137
      %s139 = ssub.s32 %s32, %s41
      %s140 = sor.u32 %s138, %s139
      %p141 = scmp.eq.s32.totalorder %s140, 0
      %s143 = sadd.s32 %s142, 1
      %s144 = scalar_select %p141, %s142, %s143
      %p147 = pneg %p141
      %p148 = scmp.eq.s32.totalorder %s23, 7
      %p149 = por %p147, %p148
      %p150 = scmp.ne.s32.totalorder %s142, %s145
      %p151 = scmp.eq.s32.totalorder %s23, 0
      %p152 = por %p150, %p151
      %p153 = scmp.ne.s32.totalorder %s142, %s145
      %p154 = scmp.eq.s32.totalorder %s28, 7
      %p155 = por %p153, %p154
      %p156 = scmp.ne.s32.totalorder %s145, %s146
      %p157 = scmp.eq.s32.totalorder %s28, 0
      %p158 = por %p156, %p157
      %p159 = scmp.ne.s32.totalorder %s145, %s146
      %p160 = scmp.eq.s32.totalorder %s29, 7
      %p161 = por %p159, %p160
      %p163 = scmp.ne.s32.totalorder %s146, %s162
      %p164 = scmp.eq.s32.totalorder %s29, 0
      %p165 = por %p163, %p164
      %s166 = ssub.s32 %s30, %s49
      %s167 = ssub.s32 %s31, %s45
      %s168 = sor.u32 %s166, %s167
      %s169 = ssub.s32 %s32, %s41
      %s170 = sor.u32 %s168, %s169
      %p171 = scmp.eq.s32.totalorder %s170, 0
      %s173 = sadd.s32 %s172, 1
      %s174 = scalar_select %p171, %s172, %s173
      %p177 = pneg %p171
      %p178 = scmp.eq.s32.totalorder %s23, 7
      %p179 = por %p177, %p178
      %p180 = scmp.ne.s32.totalorder %s172, %s175
      %p181 = scmp.eq.s32.totalorder %s23, 0
      %p182 = por %p180, %p181
      %p183 = scmp.ne.s32.totalorder %s172, %s175
      %p184 = scmp.eq.s32.totalorder %s28, 7
      %p185 = por %p183, %p184
      %p186 = scmp.ne.s32.totalorder %s175, %s176
      %p187 = scmp.eq.s32.totalorder %s28, 0
      %p188 = por %p186, %p187
      %p189 = scmp.ne.s32.totalorder %s175, %s176
      %p190 = scmp.eq.s32.totalorder %s29, 7
      %p191 = por %p189, %p190
      %p193 = scmp.ne.s32.totalorder %s176, %s192
      %p194 = scmp.eq.s32.totalorder %s29, 0
      %p195 = por %p193, %p194
      %p196 = scmp.le.s32.totalorder 1, %s23
      %p197 = scmp.lt.s32.totalorder %s23, 9
      %p198 = pnand %p196, %p197
      %p199 = pneg %p198
      // Predicated region
      $region9: #{tpu_custom_call.1} parent=5 // pred_check
        _
      $region10: #{tpu_custom_call.1} parent=5 // pred_check_branch
        %201 = sbr.rel (%p198) target = $region12
      $region11: #{tpu_custom_call.1} parent=5 // pred_region
        %s202 = ssub.s32 %s23, 1
      $region12: #{tpu_custom_call.1} parent=5 // pred_fallthru
        _
      %p203 = scmp.lt.s32.totalorder %s23, 8
      // Predicated region
      $region13: #{tpu_custom_call.1} parent=5 // pred_check
        %p204 = pneg %p203
      $region14: #{tpu_custom_call.1} parent=5 // pred_check_branch
        %206 = sbr.rel (%p204) target = $region16
      $region15: #{tpu_custom_call.1} parent=5 // pred_region
        // Predicated region
        $region17: #{tpu_custom_call.1} parent=15 // pred_check
          %p207 = pneg %p66
        $region18: #{tpu_custom_call.1} parent=15 // pred_check_branch
          %209 = sbr.rel (%p207) target = $region20
        $region19: #{tpu_custom_call.1} parent=15 // pred_region
          %s210 = sand.u32 %s56, 1
          %s211 = scalar_lea.sflag [#allocation3], %s210
          %s212 = sand.u32 %s56, 1
          %s213 = smul.addr %s212, 8
          %s214 = scalar_lea.vmem [#allocation2], %s213
          %216 = vsyncadd %s211, 0
          %s217 = sadd.s32 %s32, %s31
          %s218 = smul.addr %s30, 4
          %s219 = sadd.s32 %s217, %s218
          %s220 = smul.addr %s219, 8
          %s221 = scalar_lea.hbm %s0, %s220
          %s223 = sshll.u32 %s221, 4
          %s224 = int_to_ptr.hbm [resolvable:$true] %s223
          %s225 = sshll.u32 %s214, 4
          %s226 = int_to_ptr.vmem [resolvable:$true] %s225
          %228 = dma.hbm_to_vmem [thread:$0]  %s224, 128, %s226, %s211
        $region20: #{tpu_custom_call.1} parent=15 // pred_fallthru
          _
        // Predicated region
        $region21: #{tpu_custom_call.1} parent=15 // pred_check
          %p229 = pneg %p94
        $region22: #{tpu_custom_call.1} parent=15 // pred_check_branch
          %231 = sbr.rel (%p229) target = $region24
        $region23: #{tpu_custom_call.1} parent=15 // pred_region
          %s232 = sand.u32 %s23, 1
          %s233 = scalar_lea.sflag [#allocation6], %s232
          %s234 = sand.u32 %s84, 1
          %s235 = smul.addr %s234, 8
          %s236 = scalar_lea.vmem [#allocation5], %s235
          %238 = vsyncadd %s233, 0
          %s239 = smul.addr %s30, 4
          %s240 = sadd.s32 %s31, %s239
          %s241 = smul.addr %s240, 8
          %s242 = scalar_lea.hbm %s1, %s241
          %s244 = sshll.u32 %s242, 4
          %s245 = int_to_ptr.hbm [resolvable:$true] %s244
          %s246 = sshll.u32 %s236, 4
          %s247 = int_to_ptr.vmem [resolvable:$true] %s246
          %249 = dma.hbm_to_vmem [thread:$0]  %s245, 128, %s247, %s233
        $region24: #{tpu_custom_call.1} parent=15 // pred_fallthru
          _
        // Predicated region
        $region25: #{tpu_custom_call.1} parent=15 // pred_check
          %p250 = pneg %p122
        $region26: #{tpu_custom_call.1} parent=15 // pred_check_branch
          %252 = sbr.rel (%p250) target = $region28
        $region27: #{tpu_custom_call.1} parent=15 // pred_region
          %s253 = sand.u32 %s23, 1
          %s254 = scalar_lea.sflag [#allocation6], %s253
          %s255 = sand.u32 %s112, 1
          %s256 = smul.addr %s255, 8
          %s257 = scalar_lea.vmem [#allocation7], %s256
          %259 = vsyncadd %s254, 0
          %s260 = smul.addr %s30, 4
          %s261 = sadd.s32 %s31, %s260
          %s262 = smul.addr %s261, 8
          %s263 = scalar_lea.hbm %s2, %s262
          %s265 = sshll.u32 %s263, 4
          %s266 = int_to_ptr.hbm [resolvable:$true] %s265
          %s267 = sshll.u32 %s257, 4
          %s268 = int_to_ptr.vmem [resolvable:$true] %s267
          %270 = dma.hbm_to_vmem [thread:$0]  %s266, 128, %s268, %s254
        $region28: #{tpu_custom_call.1} parent=15 // pred_fallthru
          _
      $region16: #{tpu_custom_call.1} parent=5 // pred_fallthru
        _
      %p271 = scmp.le.s32.totalorder 1, %s23
      %p272 = scmp.lt.s32.totalorder %s23, 9
      %p273 = pnand %p271, %p272
      %p274 = pneg %p273
      // Predicated region
      $region29: #{tpu_custom_call.1} parent=5 // pred_check
        _
      $region30: #{tpu_custom_call.1} parent=5 // pred_check_branch
        %276 = sbr.rel (%p273) target = $region32
      $region31: #{tpu_custom_call.1} parent=5 // pred_region
        %s277 = ssub.s32 %s23, 1
        %s278 = sand.u32 %s59, 1
        %s279 = scalar_lea.sflag [#allocation3], %s278
        %s280 = sand.u32 %s59, 1
        %s281 = smul.addr %s280, 8
        %s282 = scalar_lea.vmem [#allocation2], %s281
        // Predicated region
        $region33: #{tpu_custom_call.1} parent=31 // pred_check
          %p283 = pneg %p72
        $region34: #{tpu_custom_call.1} parent=31 // pred_check_branch
          %285 = sbr.rel (%p283) target = $region36
        $region35: #{tpu_custom_call.1} parent=31 // pred_region
          %287 = dma.done %s279, 128
        $region36: #{tpu_custom_call.1} parent=31 // pred_fallthru
          _
        %s288 = sand.u32 %s28, 1
        %s289 = scalar_lea.sflag [#allocation6], %s288
        %s290 = sand.u32 %s87, 1
        %s291 = smul.addr %s290, 8
        %s292 = scalar_lea.vmem [#allocation5], %s291
        // Predicated region
        $region37: #{tpu_custom_call.1} parent=31 // pred_check
          %p293 = pneg %p100
        $region38: #{tpu_custom_call.1} parent=31 // pred_check_branch
          %295 = sbr.rel (%p293) target = $region40
        $region39: #{tpu_custom_call.1} parent=31 // pred_region
          %297 = dma.done %s289, 128
        $region40: #{tpu_custom_call.1} parent=31 // pred_fallthru
          _
        %s298 = sand.u32 %s28, 1
        %s299 = scalar_lea.sflag [#allocation6], %s298
        %s300 = sand.u32 %s115, 1
        %s301 = smul.addr %s300, 8
        %s302 = scalar_lea.vmem [#allocation7], %s301
        // Predicated region
        $region41: #{tpu_custom_call.1} parent=31 // pred_check
          %p303 = pneg %p128
        $region42: #{tpu_custom_call.1} parent=31 // pred_check_branch
          %305 = sbr.rel (%p303) target = $region44
        $region43: #{tpu_custom_call.1} parent=31 // pred_region
          %307 = dma.done %s299, 128
        $region44: #{tpu_custom_call.1} parent=31 // pred_fallthru
          _
        %s308 = sand.u32 %s59, 1
        %s309 = scalar_lea.sflag [#allocation3], %s308
        %s310 = sand.u32 %s59, 1
        %s311 = smul.addr %s310, 8
        %s312 = scalar_lea.vmem [#allocation2], %s311
        %p313 = pneg %p72
        %p314 = pneg %p69
        %s315 = sand.u32 %s28, 1
        %s316 = scalar_lea.sflag [#allocation6], %s315
        %s317 = sand.u32 %s87, 1
        %s318 = smul.addr %s317, 8
        %s319 = scalar_lea.vmem [#allocation5], %s318
        %p320 = pneg %p100
        %p321 = pneg %p97
        %s322 = sand.u32 %s28, 1
        %s323 = scalar_lea.sflag [#allocation6], %s322
        %s324 = sand.u32 %s115, 1
        %s325 = smul.addr %s324, 8
        %s326 = scalar_lea.vmem [#allocation7], %s325
        %p327 = pneg %p128
        %p328 = pneg %p125
        %p329 = pneg %p158
        %p330 = pneg %p155
        %s331 = sand.u32 %s145, 1
        %s332 = scalar_lea.sflag [#allocation4], %s331
        %s333 = sand.u32 %s145, 1
        %s334 = smul.addr %s333, 8
        %s335 = scalar_lea.vmem [#allocation8], %s334
        %p336 = pneg %p188
        %p337 = pneg %p185
        %s338 = sand.u32 %s175, 1
        %s339 = scalar_lea.sflag [#allocation10], %s338
        %s340 = sand.u32 %s175, 1
        %s341 = smul.addr %s340, 8
        %s342 = scalar_lea.vmem [#allocation9], %s341
        %v343 = vld [vmem:[%s282] sm:$0xff]
        %v344 = vld [vmem:[%s292] sm:$0xff]
        %v345 = vld [vmem:[%s302] sm:$0xff]
        %v346 = vmul.f32 %v343, 0.17677669
        %vm347 = vcmask 261120
        %v349 = vsel %vm347, %v346, 0
        %v352 = vsel %vm347, %v344, 0
        %354 = vmatpush.xpose.msra.mxu0 0.0
        %355 = vmatpush.xpose.msra.mxu0 0.0
        %356 = vmatpush.xpose.msra.mxu0 0.0
        %357 = vmatpush.xpose.msra.mxu0 0.0
        %358 = vmatpush.xpose.msra.mxu0 0.0
        %359 = vmatpush.xpose.msra.mxu0 0.0
        %360 = vmatpush.xpose.msra.mxu0 0.0
        %361 = vmatpush.xpose.msra.mxu0 0.0
        %362 = vmatpush.xpose.msra.mxu0 0.0
        %363 = vmatpush.xpose.msra.mxu0 0.0
        %364 = vmatpush.xpose.msra.mxu0 0.0
        %365 = vmatpush.xpose.msra.mxu0 0.0
        %366 = vmatpush.xpose.msra.mxu0 0.0
        %367 = vmatpush.xpose.msra.mxu0 0.0
        %368 = vmatpush.xpose.msra.mxu0 0.0
        %369 = vmatpush.xpose.msra.mxu0 %v352
        %370 = vmatmul.f32.gmra.mxu0 %v349
        %v371 = vpop.f32.mrf.mxu0
        %v372 = vadd.f32 0.0, %v371
        %373 = vdwg.mxu0
        %vm374 = vcmask 64512
        %v375 = vsel %vm374, %v372, -inf
        %376 = vmax.xlane.f32.xlu0 %v375
        %v377 = vpop.xlane.xlu0 %376
        %v378 = vsub.f32 %v372, %v377
        %v379 = vmul.f32 %v378, 1.442695
        %v380 = vpow.pop %v379
        %v381 = vsel %vm374, %v380, 0.0
        %382 = vadd.xlane.f32.xlu0 %v381
        %v383 = vpop.xlane.xlu0 %382
        %v384 = vrcp.pop %v383
        %v385 = vmul.f32 %v380, %v384
        %386 = vst.msk [vmem:[%s342] sm:$0xff] %vm374, %v385
        %v388 = vsel %vm374, %v385, 0
        %390 = vmatpush.msra.mxu0 0.0
        %391 = vmatpush.msra.mxu0 0.0
        %392 = vmatpush.msra.mxu0 0.0
        %393 = vmatpush.msra.mxu0 0.0
        %394 = vmatpush.msra.mxu0 0.0
        %395 = vmatpush.msra.mxu0 0.0
        %396 = vmatpush.msra.mxu0 0.0
        %397 = vmatpush.msra.mxu0 0.0
        %398 = vmatpush.msra.mxu0 0.0
        %399 = vmatpush.msra.mxu0 0.0
        %400 = vmatpush.msra.mxu0 0.0
        %401 = vmatpush.msra.mxu0 0.0
        %402 = vmatpush.msra.mxu0 0.0
        %403 = vmatpush.msra.mxu0 0.0
        %404 = vmatpush.msra.mxu0 0.0
        %405 = vmatpush.msra.mxu0 %v345
        %406 = vmatmul.f32.gmra.mxu0 %v388
        %v407 = vpop.f32.mrf.mxu0
        %v408 = vadd.f32 0.0, %v407
        %409 = vdwg.mxu0
        %410 = vst.msk [vmem:[%s335] sm:$0xff] %vm347, %v408
        %s411 = sand.u32 %s145, 1
        %s412 = scalar_lea.sflag [#allocation4], %s411
        %s413 = sand.u32 %s145, 1
        %s414 = smul.addr %s413, 8
        %s415 = scalar_lea.vmem [#allocation8], %s414
        %s416 = sand.u32 %s175, 1
        %s417 = scalar_lea.sflag [#allocation10], %s416
        %s418 = sand.u32 %s175, 1
        %s419 = smul.addr %s418, 8
        %s420 = scalar_lea.vmem [#allocation9], %s419
        // Predicated region
        $region45: #{tpu_custom_call.1} parent=31 // pred_check
          %p421 = pneg %p155
        $region46: #{tpu_custom_call.1} parent=31 // pred_check_branch
          %423 = sbr.rel (%p421) target = $region48
        $region47: #{tpu_custom_call.1} parent=31 // pred_region
          %425 = vsyncadd %s412, 0
          %s426 = sadd.s32 %s35, %s34
          %s427 = smul.addr %s33, 4
          %s428 = sadd.s32 %s426, %s427
          %s429 = smul.addr %s428, 8
          %s430 = scalar_lea.hbm %s3, %s429
          %s432 = sshll.u32 %s415, 4
          %s433 = int_to_ptr.vmem [resolvable:$true] %s432
          %s434 = sshll.u32 %s430, 4
          %s435 = int_to_ptr.hbm [resolvable:$true] %s434
          %437 = dma.vmem_to_hbm [thread:$0]  %s433, 128, %s435, %s412
        $region48: #{tpu_custom_call.1} parent=31 // pred_fallthru
          _
        // Predicated region
        $region49: #{tpu_custom_call.1} parent=31 // pred_check
          %p438 = pneg %p185
        $region50: #{tpu_custom_call.1} parent=31 // pred_check_branch
          %440 = sbr.rel (%p438) target = $region52
        $region51: #{tpu_custom_call.1} parent=31 // pred_region
          %442 = vsyncadd %s417, 0
          %s443 = sadd.s32 %s35, %s34
          %s444 = smul.addr %s33, 4
          %s445 = sadd.s32 %s443, %s444
          %s446 = smul.addr %s445, 8
          %s447 = scalar_lea.hbm %s4, %s446
          %s449 = sshll.u32 %s420, 4
          %s450 = int_to_ptr.vmem [resolvable:$true] %s449
          %s451 = sshll.u32 %s447, 4
          %s452 = int_to_ptr.hbm [resolvable:$true] %s451
          %454 = dma.vmem_to_hbm [thread:$0]  %s450, 128, %s452, %s417
        $region52: #{tpu_custom_call.1} parent=31 // pred_fallthru
          _
      $region32: #{tpu_custom_call.1} parent=5 // pred_fallthru
        _
      %p455 = scmp.le.s32.totalorder 2, %s23
      // Predicated region
      $region53: #{tpu_custom_call.1} parent=5 // pred_check
        %p456 = pneg %p455
      $region54: #{tpu_custom_call.1} parent=5 // pred_check_branch
        %458 = sbr.rel (%p456) target = $region56
      $region55: #{tpu_custom_call.1} parent=5 // pred_region
        %s459 = ssub.s32 %s23, 2
        // Predicated region
        $region57: #{tpu_custom_call.1} parent=55 // pred_check
          %p460 = pneg %p161
        $region58: #{tpu_custom_call.1} parent=55 // pred_check_branch
          %462 = sbr.rel (%p460) target = $region60
        $region59: #{tpu_custom_call.1} parent=55 // pred_region
          %s463 = sand.u32 %s146, 1
          %s464 = scalar_lea.sflag [#allocation4], %s463
          %s465 = sand.u32 %s146, 1
          %s466 = smul.addr %s465, 8
          %s467 = scalar_lea.vmem [#allocation8], %s466
          %469 = dma.done %s464, 128
        $region60: #{tpu_custom_call.1} parent=55 // pred_fallthru
          _
        // Predicated region
        $region61: #{tpu_custom_call.1} parent=55 // pred_check
          %p470 = pneg %p191
        $region62: #{tpu_custom_call.1} parent=55 // pred_check_branch
          %472 = sbr.rel (%p470) target = $region64
        $region63: #{tpu_custom_call.1} parent=55 // pred_region
          %s473 = sand.u32 %s176, 1
          %s474 = scalar_lea.sflag [#allocation10], %s473
          %s475 = sand.u32 %s176, 1
          %s476 = smul.addr %s475, 8
          %s477 = scalar_lea.vmem [#allocation9], %s476
          %479 = dma.done %s474, 128
        $region64: #{tpu_custom_call.1} parent=55 // pred_fallthru
          _
      $region56: #{tpu_custom_call.1} parent=5 // pred_fallthru
        _
    $region6: #{tpu_custom_call.1} parent=1 // loop_footer
      %s27 = sadd.s32 1, %s23
    $region7: #{tpu_custom_call.1} parent=1 // loop_footer_branch
      %22 = sbr.rel target = $region3
    $region8: #{tpu_custom_call.1} parent=1 // loop_exit
      _
    %480 = vsyncpa [#allocation3], 1
    %s481 = scalar_lea.sflag [#allocation3], 1
    %482 = vsyncpa %s481, 1
    %483 = vsyncpa [#allocation6], 1
    %s484 = scalar_lea.sflag [#allocation6], 1
    %485 = vsyncpa %s484, 1
    %486 = vsyncpa [#allocation4], 1
    %s487 = scalar_lea.sflag [#allocation4], 1
    %488 = vsyncpa %s487, 1
    %489 = vsyncpa [#allocation10], 1
    %s490 = scalar_lea.sflag [#allocation10], 1
    %491 = vsyncpa %s490, 1

</llo_original>
